<compile_context>
chip_gen: v7x
topology: tpu7x:2x2x1
jax: 0.10.0
libtpu: 0.0.40
codegen_flags: <defaults>
</compile_context>

<pallas_src>
import functools

import jax
import jax.numpy as jnp
from jax.experimental import pallas as pl
from jax.experimental.pallas import tpu as pltpu


def _attention_kernel(seq_ref, hs_ref, mask_ref, table_ref, out_ref, *,
                      inv_temper, compute_dtype):
    """One (batch-tile, character-tile) block per grid step.

    seq_ref   : (BT, W)      int32   word indices for this batch tile
    hs_ref    : (BT, TC, H)  hidden_state tile
    mask_ref  : (BT, TC, W)  word mask matrix tile
    table_ref : (V, H)       embedding table (VMEM-resident across the grid)
    out_ref   : (BT, TC, H)  character attention output tile
    """
    bt, w_len = seq_ref.shape
    v_size, h = table_ref.shape

    # ---- Embedding gather on the MXU: one_hot(word_seq) @ table. ----
    # (same expand_dims/compare pattern as segment-id masks in flash attention)
    seq = seq_ref[...]                                                # (BT, W) i32
    iota_v = jax.lax.broadcasted_iota(jnp.int32, (bt, w_len, v_size), 2)
    onehot = (seq[:, :, None] == iota_v).astype(compute_dtype)        # (BT, W, V)
    table = jnp.broadcast_to(table_ref[...].astype(compute_dtype),
                             (bt, v_size, h))                         # (BT, V, H)
    emb = jnp.einsum('bwv,bvh->bwh', onehot, table,
                     preferred_element_type=jnp.float32)              # (BT, W, H) f32
    emb_c = emb.astype(compute_dtype)

    # ---- u = hidden_state @ embedding^T / temper, contracted on H
    #      (no transposed copy of the embedding is materialized). ----
    hs = hs_ref[...].astype(compute_dtype)                            # (BT, TC, H)
    u = jnp.einsum('bch,bwh->bcw', hs, emb_c,
                   preferred_element_type=jnp.float32) * inv_temper   # (BT, TC, W)

    # ---- Masked exp + normalize, f32 (matches the torch forward). ----
    # TODO(synk): torch uses an unstabilized exp (no row-max subtraction); kept
    # as-is for fidelity, so extreme logits overflow exactly like the reference.
    exp_u = jnp.exp(u)
    delta = exp_u * mask_ref[...].astype(jnp.float32)
    denom = jnp.sum(delta, axis=2, keepdims=True) + 1e-10             # (BT, TC, 1)
    attn = delta * pl.reciprocal(denom, approx=False)                 # (BT, TC, W)

    # ---- character_attention = attention @ embedding. ----
    out_ref[...] = jnp.einsum('bcw,bwh->bch', attn.astype(compute_dtype), emb_c,
                              preferred_element_type=jnp.float32
                              ).astype(out_ref.dtype)


def _pick_c_tile(c):
    """Character-axis tile: whole axis when small, else a divisor <= 512."""
    if c <= 512:
        return c
    for t in (512, 256, 128, 64, 32, 16, 8):
        if c % t == 0:
            return t
    return c   # TODO(synk): ragged C (not a multiple of 8) handled as one block


def _pick_b_tile(b, tc):
    """Batch-block tiny-C problems so a grid step has enough rows of work."""
    if tc >= 256:
        return 1
    bt = b
    while bt > 1 and (b % bt != 0 or bt * tc > 1024):
        bt -= 1
    return bt


def attention_forward(word_seq, hidden_state, word_mask_matrix, embedding_table,
                      *, compute_dtype=None):
    """Pallas implementation of Attention.forward.

    word_seq          : (B, W) int32
    hidden_state      : (B, C, H) float
    word_mask_matrix  : (B, C, W) float
    embedding_table   : (V, H) float   (row 0 is the padding row, all zeros)
    compute_dtype     : matmul operand dtype (e.g. jnp.bfloat16 for v6e/v7x MXU);
                        accumulation is always f32.
    returns           : (B, C, H) with hidden_state's dtype
    """
    B, C, H = hidden_state.shape
    W = word_seq.shape[1]
    V = embedding_table.shape[0]
    inv_temper = 1.0 / (float(H) ** 0.5)
    if compute_dtype is None:
        compute_dtype = hidden_state.dtype

    tc = _pick_c_tile(C)
    bt = _pick_b_tile(B, tc)
    grid = (B // bt, C // tc)

    word_seq = word_seq.astype(jnp.int32)
    kernel = functools.partial(_attention_kernel, inv_temper=inv_temper,
                               compute_dtype=compute_dtype)

    # TODO(synk): for vocabularies too large to keep the (V, H) table resident
    # in VMEM, switch the embedding operand to a scalar-prefetch DMA row-gather.
    return pl.pallas_call(
        kernel,
        out_shape=jax.ShapeDtypeStruct((B, C, H), hidden_state.dtype),
        grid_spec=pltpu.PrefetchScalarGridSpec(
            num_scalar_prefetch=0,
            grid=grid,
            in_specs=[
                pl.BlockSpec((bt, W), lambda b, c: (b, 0)),
                pl.BlockSpec((bt, tc, H), lambda b, c: (b, c, 0)),
                pl.BlockSpec((bt, tc, W), lambda b, c: (b, c, 0)),
                pl.BlockSpec((V, H), lambda b, c: (0, 0)),     # resident table
            ],
            out_specs=pl.BlockSpec((bt, tc, H), lambda b, c: (b, c, 0)),
        ),
        compiler_params=pltpu.CompilerParams(
            dimension_semantics=("parallel", "parallel")),
    )(word_seq, hidden_state, word_mask_matrix, embedding_table)


def attention_reference(word_seq, hidden_state, word_mask_matrix, embedding_table):
    """Plain-JAX reference matching the PyTorch forward exactly."""
    H = hidden_state.shape[-1]
    temper = float(H) ** 0.5
    embedding = jnp.take(embedding_table, word_seq, axis=0)          # (B, W, H)
    tmp = jnp.transpose(embedding, (0, 2, 1))                        # (B, H, W)
    u = jnp.matmul(hidden_state, tmp) / temper                       # (B, C, W)
    exp_u = jnp.exp(u)
    delta = exp_u * word_mask_matrix
    s = jnp.sum(delta, axis=2, keepdims=True)
    attn = delta / (s + 1e-10)
    return jnp.matmul(attn, embedding)                               # (B, C, H)


if __name__ == "__main__":
    key = jax.random.PRNGKey(0)

    # Small shapes consistent with the module's forward
    B = 2           # batch
    C = 8           # character_seq_len
    W = 8           # word seq len
    H = 32          # hidden_size
    V = 16          # word_size (vocab)

    k_emb, k_seq, k_hs, k_mask = jax.random.split(key, 4)

    # Embedding(word_size, hidden_size, padding_idx=0): padding row is zero.
    emb_table = jax.random.normal(k_emb, (V, H), dtype=jnp.float32) * 0.02
    emb_table = emb_table.at[0].set(0.0)

    word_seq = jax.random.randint(k_seq, (B, W), minval=0, maxval=V, dtype=jnp.int32)
    hidden_state = jax.random.normal(k_hs, (B, C, H), dtype=jnp.float32)
    word_mask = (jax.random.uniform(k_mask, (B, C, W)) > 0.3).astype(jnp.float32)

    ref = jax.block_until_ready(
        attention_reference(word_seq, hidden_state, word_mask, emb_table))

    # f32 path: bit-for-bit semantics of the module.
    out = jax.block_until_ready(
        attention_forward(word_seq, hidden_state, word_mask, emb_table))
    assert out.shape == (B, C, H), out.shape
    assert jnp.allclose(out, ref, atol=1e-5, rtol=1e-5), "f32 mismatch vs reference"

    # bf16 MXU path (v6e/v7x): operands cast in-kernel, accumulation stays f32.
    out_bf16 = jax.block_until_ready(
        attention_forward(word_seq, hidden_state, word_mask, emb_table,
                          compute_dtype=jnp.bfloat16))
    assert out_bf16.shape == (B, C, H), out_bf16.shape
    assert jnp.allclose(out_bf16, ref, atol=5e-3, rtol=5e-2), "bf16 mismatch vs reference"

    print("KERNEL_OK")
</pallas_src>

<mosaic_0001>
module attributes {stable_mosaic.version = 11 : i64} {
  func.func @_attention_kernel(%arg0: i32, %arg1: i32, %arg2: memref<2x8xi32, #tpu.memory_space<vmem>>, %arg3: memref<2x8x32xf32, #tpu.memory_space<vmem>>, %arg4: memref<2x8x8xf32, #tpu.memory_space<vmem>>, %arg5: memref<16x32xf32, #tpu.memory_space<vmem>>, %arg6: memref<2x8x32xf32, #tpu.memory_space<vmem>>) attributes {dimension_semantics = [#tpu.dimension_semantics<parallel>, #tpu.dimension_semantics<parallel>], iteration_bounds = array<i64: 1, 1>, scalar_prefetch = 0 : i64, scratch_operands = 0 : i64, tpu.core_type = #tpu.core_type<tc>, window_params = [{transform_indices = @transform_0, window_bounds = array<i64: 2, 8>}, {transform_indices = @transform_1, window_bounds = array<i64: 2, 8, 32>}, {transform_indices = @transform_2, window_bounds = array<i64: 2, 8, 8>}, {pipeline_mode = #tpu.pipeline_mode<synchronous>, transform_indices = @transform_3, window_bounds = array<i64: 16, 32>}, {transform_indices = @transform_4, window_bounds = array<i64: 2, 8, 32>}]} {
    %c0 = arith.constant 0 : index
    %c0_0 = arith.constant 0 : index
    %0 = vector.load %arg2[%c0, %c0_0] : memref<2x8xi32, #tpu.memory_space<vmem>>, vector<2x8xi32>
    %1 = tpu.iota {dimensions = array<i32: 2>} : vector<2x8x16xi32>
    %2 = vector.shape_cast %0 : vector<2x8xi32> to vector<2x8x1xi32>
    %3 = vector.broadcast %2 : vector<2x8x1xi32> to vector<2x8x16xi32>
    %4 = arith.cmpi eq, %3, %1 : vector<2x8x16xi32>
    %5 = arith.extui %4 : vector<2x8x16xi1> to vector<2x8x16xi32>
    %6 = arith.sitofp %5 : vector<2x8x16xi32> to vector<2x8x16xf32>
    %c0_1 = arith.constant 0 : index
    %c0_2 = arith.constant 0 : index
    %7 = vector.load %arg5[%c0_1, %c0_2] : memref<16x32xf32, #tpu.memory_space<vmem>>, vector<16x32xf32>
    %8 = vector.shape_cast %7 : vector<16x32xf32> to vector<1x16x32xf32>
    %9 = vector.broadcast %8 : vector<1x16x32xf32> to vector<2x16x32xf32>
    "tpu.trace_start"() <{level = 10 : i32, message = "bwv,bvh->bwh"}> : () -> ()
    %cst = arith.constant dense<0.000000e+00> : vector<2x8x32xf32>
    %10 = tpu.matmul %6, %9, %cst {dimension_numbers = #tpu.dot_dimension_numbers<[2], [1], [1], [2], [0, 0, 0, 1, 1, 2], [0], [0]>} : vector<2x8x16xf32>, vector<2x16x32xf32>, vector<2x8x32xf32> -> vector<2x8x32xf32>
    "tpu.trace_stop"() : () -> ()
    %c0_3 = arith.constant 0 : index
    %c0_4 = arith.constant 0 : index
    %c0_5 = arith.constant 0 : index
    %11 = vector.load %arg3[%c0_3, %c0_4, %c0_5] : memref<2x8x32xf32, #tpu.memory_space<vmem>>, vector<2x8x32xf32>
    "tpu.trace_start"() <{level = 10 : i32, message = "bch,bwh->bcw"}> : () -> ()
    %cst_6 = arith.constant dense<0.000000e+00> : vector<2x8x8xf32>
    %12 = tpu.matmul %11, %10, %cst_6 {dimension_numbers = #tpu.dot_dimension_numbers<[2], [2], [1], [1], [0, 0, 0, 1, 1, 1], [0], [0]>} : vector<2x8x32xf32>, vector<2x8x32xf32>, vector<2x8x8xf32> -> vector<2x8x8xf32>
    "tpu.trace_stop"() : () -> ()
    %cst_7 = arith.constant 0.176776692 : f32
    %13 = vector.broadcast %cst_7 : f32 to vector<2x8x8xf32>
    %14 = arith.mulf %12, %13 : vector<2x8x8xf32>
    %15 = math.exp %14 : vector<2x8x8xf32>
    %c0_8 = arith.constant 0 : index
    %c0_9 = arith.constant 0 : index
    %c0_10 = arith.constant 0 : index
    %16 = vector.load %arg4[%c0_8, %c0_9, %c0_10] : memref<2x8x8xf32, #tpu.memory_space<vmem>>, vector<2x8x8xf32>
    %17 = arith.mulf %15, %16 : vector<2x8x8xf32>
    %cst_11 = arith.constant dense<0.000000e+00> : vector<2x8xf32>
    %18 = vector.multi_reduction <add>, %17, %cst_11 [2] : vector<2x8x8xf32> to vector<2x8xf32>
    %19 = vector.shape_cast %18 : vector<2x8xf32> to vector<2x8x1xf32>
    %cst_12 = arith.constant 1.000000e-10 : f32
    %20 = vector.broadcast %cst_12 : f32 to vector<2x8x1xf32>
    %21 = arith.addf %19, %20 : vector<2x8x1xf32>
    %22 = tpu.reciprocal %21 : vector<2x8x1xf32> -> vector<2x8x1xf32>
    %23 = vector.broadcast %22 : vector<2x8x1xf32> to vector<2x8x8xf32>
    %24 = arith.mulf %17, %23 : vector<2x8x8xf32>
    "tpu.trace_start"() <{level = 10 : i32, message = "bcw,bwh->bch"}> : () -> ()
    %cst_13 = arith.constant dense<0.000000e+00> : vector<2x8x32xf32>
    %25 = tpu.matmul %24, %10, %cst_13 {dimension_numbers = #tpu.dot_dimension_numbers<[2], [1], [1], [2], [0, 0, 0, 1, 1, 2], [0], [0]>} : vector<2x8x8xf32>, vector<2x8x32xf32>, vector<2x8x32xf32> -> vector<2x8x32xf32>
    "tpu.trace_stop"() : () -> ()
    %c0_14 = arith.constant 0 : index
    %c0_15 = arith.constant 0 : index
    %c0_16 = arith.constant 0 : index
    %26 = vector.load %arg6[%c0_14, %c0_15, %c0_16] : memref<2x8x32xf32, #tpu.memory_space<vmem>>, vector<2x8x32xf32>
    tpu.vector_store %arg6[%c0_14, %c0_15, %c0_16], %25 {strides = array<i32>} : memref<2x8x32xf32, #tpu.memory_space<vmem>>, vector<2x8x32xf32>,
    return
  }
  func.func @transform_0(%arg0: i32, %arg1: i32) -> (i32, i32) {
    %c0_i32 = arith.constant 0 : i32
    %c0_i32_0 = arith.constant 0 : i32
    return %arg0, %c0_i32 : i32, i32
  }
  func.func @transform_1(%arg0: i32, %arg1: i32) -> (i32, i32, i32) {
    %c0_i32 = arith.constant 0 : i32
    %c0_i32_0 = arith.constant 0 : i32
    return %arg0, %arg1, %c0_i32 : i32, i32, i32
  }
  func.func @transform_2(%arg0: i32, %arg1: i32) -> (i32, i32, i32) {
    %c0_i32 = arith.constant 0 : i32
    %c0_i32_0 = arith.constant 0 : i32
    return %arg0, %arg1, %c0_i32 : i32, i32, i32
  }
  func.func @transform_3(%arg0: i32, %arg1: i32) -> (i32, i32) {
    %c0_i32 = arith.constant 0 : i32
    %c0_i32_0 = arith.constant 0 : i32
    %c0_i32_1 = arith.constant 0 : i32
    return %c0_i32, %c0_i32_0 : i32, i32
  }
  func.func @transform_4(%arg0: i32, %arg1: i32) -> (i32, i32, i32) {
    %c0_i32 = arith.constant 0 : i32
    %c0_i32_0 = arith.constant 0 : i32
    return %arg0, %arg1, %c0_i32 : i32, i32, i32
  }
}

</mosaic_0001>

<llo_original>
// kernel: tpu_custom_call.1
$region0: #{tpu_custom_call.1}
  #allocation0 [shape = 'u32[]', space=smem, size = 0x4, offset = 0x4, fixed_abs, tag = 'smem constant byte address 0x4 - core index']
  #allocation1 [shape = 'u32[144,128]{1,0:T(1,128)}', space=vmem, size = 0x12000, scoped, tag = 'internal scratch']
  %s0 = inlined_call_operand.hbm [shape: s32[2,8], index: 0, kind: input, shape index: {}]
  %s1 = inlined_call_operand.hbm [shape: f32[2,8,32], index: 1, kind: input, shape index: {}]
  %s2 = inlined_call_operand.hbm [shape: f32[2,8,8], index: 2, kind: input, shape index: {}]
  %s3 = inlined_call_operand.hbm [shape: f32[16,32], index: 3, kind: input, shape index: {}]
  %s4 = inlined_call_operand.hbm [shape: f32[2,8,32], index: 4, kind: output, shape index: {}]
  %s5 = sld [smem:[#allocation0]]
  $region42: #{tpu_custom_call.1} parent=0
    _
  %s7 = ssub.s32 1, %s5
  %s8 = scalar_select 0, %s7, %s5
  $region1: #{tpu_custom_call.1} parent=0
    #allocation2 [shape = 'u8[1024]{0}', space=vmem, size = 0x400, scoped, tag = 'input window, operand 0, single buffered']
    #allocation3 [shape = 's32[1]{0}', space=sflag, size = 0x4, scoped, tag = 'scoped memory for tpu_custom_call.1']
    #allocation4 [shape = 's32[1]{0}', space=sflag, size = 0x4, scoped, tag = 'scoped memory for tpu_custom_call.1']
    #allocation5 [shape = 'u8[8192]{0}', space=vmem, size = 0x2000, scoped, tag = 'input window, operand 1, single buffered']
    #allocation6 [shape = 's32[1]{0}', space=sflag, size = 0x4, scoped, tag = 'scoped memory for tpu_custom_call.1']
    #allocation7 [shape = 'u8[8192]{0}', space=vmem, size = 0x2000, scoped, tag = 'input window, operand 2, single buffered']
    #allocation8 [shape = 'u8[8192]{0}', space=vmem, size = 0x2000, scoped, tag = 'input window, operand 3, single buffered']
    #allocation9 [shape = 's32[1]{0}', space=sflag, size = 0x4, scoped, tag = 'scoped memory for tpu_custom_call.1']
    #allocation10 [shape = 'u8[8192]{0}', space=vmem, size = 0x2000, scoped, tag = 'output window, operand 0, single buffered']
    %9 = vsyncpa [#allocation3], 0
    %10 = vsyncpa [#allocation6], 0
    %11 = vsyncpa [#allocation9], 0
    %12 = vsyncpa [#allocation4], 0
    // Predicated region
    $region2: #{tpu_custom_call.1} parent=1 // pred_check
      _
    $region3: #{tpu_custom_call.1} parent=1 // pred_check_branch
      %14 = sbr.rel (0) target = $region5
    $region4: #{tpu_custom_call.1} parent=1 // pred_region
      %s16 = ssub.s32 32, 32
      %17 = vsyncadd [#allocation3], %s16
      %s19 = sshll.u32 [#allocation2], 4
      %s20 = int_to_ptr.vmem [resolvable:$true] %s19
      %22 = dma.hbm_to_vmem [thread:$0]  %s0, 32, %s20, [#allocation3]
    $region5: #{tpu_custom_call.1} parent=1 // pred_fallthru
      _
    // Predicated region
    $region6: #{tpu_custom_call.1} parent=1 // pred_check
      _
    $region7: #{tpu_custom_call.1} parent=1 // pred_check_branch
      %24 = sbr.rel (0) target = $region9
    $region8: #{tpu_custom_call.1} parent=1 // pred_region
      %s26 = ssub.s32 256, 256
      %27 = vsyncadd [#allocation6], %s26
      %s28 = sshll.u32 [#allocation5], 4
      %s29 = int_to_ptr.vmem [resolvable:$true] %s28
      %34 = dma.hbm_to_vmem [thread:$0]  %s1, 256, %s29, [#allocation6], 128, 128, 8
    $region9: #{tpu_custom_call.1} parent=1 // pred_fallthru
      _
    // Predicated region
    $region10: #{tpu_custom_call.1} parent=1 // pred_check
      _
    $region11: #{tpu_custom_call.1} parent=1 // pred_check_branch
      %36 = sbr.rel (0) target = $region13
    $region12: #{tpu_custom_call.1} parent=1 // pred_region
      %s38 = ssub.s32 256, 256
      %39 = vsyncadd [#allocation6], %s38
      %s40 = sshll.u32 [#allocation7], 4
      %s41 = int_to_ptr.vmem [resolvable:$true] %s40
      %46 = dma.hbm_to_vmem [thread:$0]  %s2, 256, %s41, [#allocation6], 128, 128, 8
    $region13: #{tpu_custom_call.1} parent=1 // pred_fallthru
      _
    // Predicated region
    $region14: #{tpu_custom_call.1} parent=1 // pred_check
      _
    $region15: #{tpu_custom_call.1} parent=1 // pred_check_branch
      %48 = sbr.rel (0) target = $region17
    $region16: #{tpu_custom_call.1} parent=1 // pred_region
      %s50 = ssub.s32 256, 256
      %51 = vsyncadd [#allocation9], %s50
      %s52 = sshll.u32 [#allocation8], 4
      %s53 = int_to_ptr.vmem [resolvable:$true] %s52
      %58 = dma.hbm_to_vmem [thread:$0]  %s3, 256, %s53, [#allocation9], 128, 128, 8
    $region17: #{tpu_custom_call.1} parent=1 // pred_fallthru
      _
    // Predicated region
    $region18: #{tpu_custom_call.1} parent=1 // pred_check
      _
    $region19: #{tpu_custom_call.1} parent=1 // pred_check_branch
      %60 = sbr.rel (0) target = $region21
    $region20: #{tpu_custom_call.1} parent=1 // pred_region
      %61 = dma.done [#allocation3], 32
    $region21: #{tpu_custom_call.1} parent=1 // pred_fallthru
      _
    // Predicated region
    $region22: #{tpu_custom_call.1} parent=1 // pred_check
      _
    $region23: #{tpu_custom_call.1} parent=1 // pred_check_branch
      %63 = sbr.rel (0) target = $region25
    $region24: #{tpu_custom_call.1} parent=1 // pred_region
      %64 = dma.done [#allocation6], 256
    $region25: #{tpu_custom_call.1} parent=1 // pred_fallthru
      _
    // Predicated region
    $region26: #{tpu_custom_call.1} parent=1 // pred_check
      _
    $region27: #{tpu_custom_call.1} parent=1 // pred_check_branch
      %66 = sbr.rel (0) target = $region29
    $region28: #{tpu_custom_call.1} parent=1 // pred_region
      %67 = dma.done [#allocation6], 256
    $region29: #{tpu_custom_call.1} parent=1 // pred_fallthru
      _
    // Predicated region
    $region30: #{tpu_custom_call.1} parent=1 // pred_check
      _
    $region31: #{tpu_custom_call.1} parent=1 // pred_check_branch
      %69 = sbr.rel (0) target = $region33
    $region32: #{tpu_custom_call.1} parent=1 // pred_region
      %70 = dma.done [#allocation9], 256
    $region33: #{tpu_custom_call.1} parent=1 // pred_fallthru
      _
    %v71 = vld [vmem:[#allocation2] sm:$0x3]
    %v72 = vlaneseq
    %v73 = vand.u32 %v72, 127
    %v74 = vlaneseq
    %v75 = vshrl.u32 %v74, 7
    %v76 = vsub.s32 0, %v75
    %v77 = vrot.slane %v71, %v76
    %79 = vbcast.lane.b32.xlu0 %v77, 256
    %v80 = vpop.permute.xlu0 %79
    %v81 = vlaneseq
    %v82 = vshrl.u32 %v81, 7
    %v83 = vsub.s32 1, %v82
    %v84 = vrot.slane %v71, %v83
    %86 = vbcast.lane.b32.xlu0 %v84, 256
    %v87 = vpop.permute.xlu0 %86
    %vm88 = vcmp.eq.s32.totalorder %v80, %v73
    %vm89 = vcmp.eq.s32.totalorder %v87, %v73
    %v90 = vsel %vm88, 1, 0
    %v91 = vsel %vm89, 1, 0
    %v92 = vcvt.s32.f32 %v90
    %v93 = vcvt.s32.f32 %v91
    %v94 = vld [vmem:[#allocation8] sm:$0xff]
    %v95 = vld [vmem:[#allocation8 + $0x8] sm:$0xff]
    %vm96 = vcmask 130048
    %v98 = vsel %vm96, %v92, 0
    %100 = vmatprep.subr.mxu0 0.0
    %101 = vmatpush1.msra.mxu0 %v94
    %102 = vmatprep.subr.mxu0 0.0
    %103 = vmatpush1.msra.mxu0 %v95
    %104 = vmatprep.subr.mxu0 0.0
    %105 = vmatpush1.msra.mxu0 0.0
    %106 = vmatprep.subr.mxu0 0.0
    %107 = vmatpush1.msra.mxu0 0.0
    %108 = vmatprep.subr.mxu0 0.0
    %109 = vmatpush1.msra.mxu0 0.0
    %110 = vmatprep.subr.mxu0 0.0
    %111 = vmatpush1.msra.mxu0 0.0
    %112 = vmatprep.subr.mxu0 0.0
    %113 = vmatpush1.msra.mxu0 0.0
    %114 = vmatprep.subr.mxu0 0.0
    %115 = vmatpush1.msra.mxu0 0.0
    %116 = vmatprep.subr.mxu0 0.0
    %117 = vmatpush1.msra.mxu0 0.0
    %118 = vmatprep.subr.mxu0 0.0
    %119 = vmatpush1.msra.mxu0 0.0
    %120 = vmatprep.subr.mxu0 0.0
    %121 = vmatpush1.msra.mxu0 0.0
    %122 = vmatprep.subr.mxu0 0.0
    %123 = vmatpush1.msra.mxu0 0.0
    %124 = vmatprep.subr.mxu0 0.0
    %125 = vmatpush1.msra.mxu0 0.0
    %126 = vmatprep.subr.mxu0 0.0
    %127 = vmatpush1.msra.mxu0 0.0
    %128 = vmatprep.subr.mxu0 0.0
    %129 = vmatpush1.msra.mxu0 0.0
    %130 = vmatprep.subr.mxu0 0.0
    %131 = vmatpush1.msra.mxu0 0.0
    %132 = vmatprep.subr.mxu0 0.0
    %133 = vmatpush1.msra.mxu0 0.0
    %134 = vmatprep.subr.mxu0 0.0
    %135 = vmatpush1.msra.mxu0 0.0
    %136 = vmatprep.subr.mxu0 0.0
    %137 = vmatpush1.msra.mxu0 0.0
    %138 = vmatprep.subr.mxu0 0.0
    %139 = vmatpush1.msra.mxu0 0.0
    %140 = vmatprep.subr.mxu0 0.0
    %141 = vmatpush1.msra.mxu0 0.0
    %142 = vmatprep.subr.mxu0 0.0
    %143 = vmatpush1.msra.mxu0 0.0
    %144 = vmatprep.subr.mxu0 0.0
    %145 = vmatpush1.msra.mxu0 0.0
    %146 = vmatprep.subr.mxu0 0.0
    %147 = vmatpush1.msra.mxu0 0.0
    %148 = vmatprep.subr.mxu0 0.0
    %149 = vmatpush1.msra.mxu0 0.0
    %150 = vmatprep.subr.mxu0 0.0
    %151 = vmatpush1.msra.mxu0 0.0
    %152 = vmatprep.subr.mxu0 0.0
    %153 = vmatpush1.msra.mxu0 0.0
    %154 = vmatprep.subr.mxu0 0.0
    %155 = vmatpush1.msra.mxu0 0.0
    %156 = vmatprep.subr.mxu0 0.0
    %157 = vmatpush1.msra.mxu0 0.0
    %158 = vmatprep.subr.mxu0 0.0
    %159 = vmatpush1.msra.mxu0 0.0
    %160 = vmatprep.subr.mxu0 0.0
    %161 = vmatpush1.msra.mxu0 0.0
    %162 = vmatprep.subr.mxu0 0.0
    %163 = vmatpush1.msra.mxu0 0.0
    %164 = vmatprep.mubr.f32.mxu0 0.0
    %165 = vmatmul.mubr.f32.gmra.mrb[0].mxu0 %v98
    %v166 = vpop.f32.mrb[0].mxu0
    %v167 = vadd.f32 0.0, %v166
    %v168 = vpop.f32.mrb[0].mxu0
    %169 = vdwg.mxu0
    %v171 = vsel %vm96, %v93, 0
    %173 = vmatprep.subr.mxu0 0.0
    %174 = vmatpush1.msra.mxu0 %v94
    %175 = vmatprep.subr.mxu0 0.0
    %176 = vmatpush1.msra.mxu0 %v95
    %177 = vmatprep.subr.mxu0 0.0
    %178 = vmatpush1.msra.mxu0 0.0
    %179 = vmatprep.subr.mxu0 0.0
    %180 = vmatpush1.msra.mxu0 0.0
    %181 = vmatprep.subr.mxu0 0.0
    %182 = vmatpush1.msra.mxu0 0.0
    %183 = vmatprep.subr.mxu0 0.0
    %184 = vmatpush1.msra.mxu0 0.0
    %185 = vmatprep.subr.mxu0 0.0
    %186 = vmatpush1.msra.mxu0 0.0
    %187 = vmatprep.subr.mxu0 0.0
    %188 = vmatpush1.msra.mxu0 0.0
    %189 = vmatprep.subr.mxu0 0.0
    %190 = vmatpush1.msra.mxu0 0.0
    %191 = vmatprep.subr.mxu0 0.0
    %192 = vmatpush1.msra.mxu0 0.0
    %193 = vmatprep.subr.mxu0 0.0
    %194 = vmatpush1.msra.mxu0 0.0
    %195 = vmatprep.subr.mxu0 0.0
    %196 = vmatpush1.msra.mxu0 0.0
    %197 = vmatprep.subr.mxu0 0.0
    %198 = vmatpush1.msra.mxu0 0.0
    %199 = vmatprep.subr.mxu0 0.0
    %200 = vmatpush1.msra.mxu0 0.0
    %201 = vmatprep.subr.mxu0 0.0
    %202 = vmatpush1.msra.mxu0 0.0
    %203 = vmatprep.subr.mxu0 0.0
    %204 = vmatpush1.msra.mxu0 0.0
    %205 = vmatprep.subr.mxu0 0.0
    %206 = vmatpush1.msra.mxu0 0.0
    %207 = vmatprep.subr.mxu0 0.0
    %208 = vmatpush1.msra.mxu0 0.0
    %209 = vmatprep.subr.mxu0 0.0
    %210 = vmatpush1.msra.mxu0 0.0
    %211 = vmatprep.subr.mxu0 0.0
    %212 = vmatpush1.msra.mxu0 0.0
    %213 = vmatprep.subr.mxu0 0.0
    %214 = vmatpush1.msra.mxu0 0.0
    %215 = vmatprep.subr.mxu0 0.0
    %216 = vmatpush1.msra.mxu0 0.0
    %217 = vmatprep.subr.mxu0 0.0
    %218 = vmatpush1.msra.mxu0 0.0
    %219 = vmatprep.subr.mxu0 0.0
    %220 = vmatpush1.msra.mxu0 0.0
    %221 = vmatprep.subr.mxu0 0.0
    %222 = vmatpush1.msra.mxu0 0.0
    %223 = vmatprep.subr.mxu0 0.0
    %224 = vmatpush1.msra.mxu0 0.0
    %225 = vmatprep.subr.mxu0 0.0
    %226 = vmatpush1.msra.mxu0 0.0
    %227 = vmatprep.subr.mxu0 0.0
    %228 = vmatpush1.msra.mxu0 0.0
    %229 = vmatprep.subr.mxu0 0.0
    %230 = vmatpush1.msra.mxu0 0.0
    %231 = vmatprep.subr.mxu0 0.0
    %232 = vmatpush1.msra.mxu0 0.0
    %233 = vmatprep.subr.mxu0 0.0
    %234 = vmatpush1.msra.mxu0 0.0
    %235 = vmatprep.subr.mxu0 0.0
    %236 = vmatpush1.msra.mxu0 0.0
    %237 = vmatprep.mubr.f32.mxu0 0.0
    %238 = vmatmul.mubr.f32.gmra.mrb[0].mxu0 %v171
    %v239 = vpop.f32.mrb[0].mxu0
    %v240 = vadd.f32 0.0, %v239
    %v241 = vpop.f32.mrb[0].mxu0
    %242 = vdwg.mxu0
    %v243 = vld [vmem:[#allocation5] sm:$0xff]
    %v244 = vld [vmem:[#allocation5 + $0x8] sm:$0xff]
    %vm245 = vcmask 261120
    %v247 = vsel %vm245, %v243, 0
    %v250 = vsel %vm245, %v167, 0
    %252 = vmatprep.subr.mxu0 0.0
    %253 = vmatpush1.xpose.msra.mxu0 %v250
    %254 = vmatprep.subr.mxu0 0.0
    %255 = vmatpush1.xpose.msra.mxu0 0.0
    %256 = vmatprep.subr.mxu0 0.0
    %257 = vmatpush1.xpose.msra.mxu0 0.0
    %258 = vmatprep.subr.mxu0 0.0
    %259 = vmatpush1.xpose.msra.mxu0 0.0
    %260 = vmatprep.subr.mxu0 0.0
    %261 = vmatpush1.xpose.msra.mxu0 0.0
    %262 = vmatprep.subr.mxu0 0.0
    %263 = vmatpush1.xpose.msra.mxu0 0.0
    %264 = vmatprep.subr.mxu0 0.0
    %265 = vmatpush1.xpose.msra.mxu0 0.0
    %266 = vmatprep.subr.mxu0 0.0
    %267 = vmatpush1.xpose.msra.mxu0 0.0
    %268 = vmatprep.subr.mxu0 0.0
    %269 = vmatpush1.xpose.msra.mxu0 0.0
    %270 = vmatprep.subr.mxu0 0.0
    %271 = vmatpush1.xpose.msra.mxu0 0.0
    %272 = vmatprep.subr.mxu0 0.0
    %273 = vmatpush1.xpose.msra.mxu0 0.0
    %274 = vmatprep.subr.mxu0 0.0
    %275 = vmatpush1.xpose.msra.mxu0 0.0
    %276 = vmatprep.subr.mxu0 0.0
    %277 = vmatpush1.xpose.msra.mxu0 0.0
    %278 = vmatprep.subr.mxu0 0.0
    %279 = vmatpush1.xpose.msra.mxu0 0.0
    %280 = vmatprep.subr.mxu0 0.0
    %281 = vmatpush1.xpose.msra.mxu0 0.0
    %282 = vmatprep.subr.mxu0 0.0
    %283 = vmatpush1.xpose.msra.mxu0 0.0
    %284 = vmatprep.subr.mxu0 0.0
    %285 = vmatpush1.xpose.msra.mxu0 0.0
    %286 = vmatprep.subr.mxu0 0.0
    %287 = vmatpush1.xpose.msra.mxu0 0.0
    %288 = vmatprep.subr.mxu0 0.0
    %289 = vmatpush1.xpose.msra.mxu0 0.0
    %290 = vmatprep.subr.mxu0 0.0
    %291 = vmatpush1.xpose.msra.mxu0 0.0
    %292 = vmatprep.subr.mxu0 0.0
    %293 = vmatpush1.xpose.msra.mxu0 0.0
    %294 = vmatprep.subr.mxu0 0.0
    %295 = vmatpush1.xpose.msra.mxu0 0.0
    %296 = vmatprep.subr.mxu0 0.0
    %297 = vmatpush1.xpose.msra.mxu0 0.0
    %298 = vmatprep.subr.mxu0 0.0
    %299 = vmatpush1.xpose.msra.mxu0 0.0
    %300 = vmatprep.subr.mxu0 0.0
    %301 = vmatpush1.xpose.msra.mxu0 0.0
    %302 = vmatprep.subr.mxu0 0.0
    %303 = vmatpush1.xpose.msra.mxu0 0.0
    %304 = vmatprep.subr.mxu0 0.0
    %305 = vmatpush1.xpose.msra.mxu0 0.0
    %306 = vmatprep.subr.mxu0 0.0
    %307 = vmatpush1.xpose.msra.mxu0 0.0
    %308 = vmatprep.subr.mxu0 0.0
    %309 = vmatpush1.xpose.msra.mxu0 0.0
    %310 = vmatprep.subr.mxu0 0.0
    %311 = vmatpush1.xpose.msra.mxu0 0.0
    %312 = vmatprep.subr.mxu0 0.0
    %313 = vmatpush1.xpose.msra.mxu0 0.0
    %314 = vmatprep.subr.mxu0 0.0
    %315 = vmatpush1.xpose.msra.mxu0 0.0
    %316 = vmatprep.mubr.f32.mxu0 0.0
    %317 = vmatmul.mubr.f32.gmra.mrb[0].mxu0 %v247
    %v318 = vpop.f32.mrb[0].mxu0
    %v319 = vadd.f32 0.0, %v318
    %v320 = vpop.f32.mrb[0].mxu0
    %321 = vdwg.mxu0
    %v323 = vsel %vm245, %v244, 0
    %v326 = vsel %vm245, %v240, 0
    %328 = vmatprep.subr.mxu0 0.0
    %329 = vmatpush1.xpose.msra.mxu0 %v326
    %330 = vmatprep.subr.mxu0 0.0
    %331 = vmatpush1.xpose.msra.mxu0 0.0
    %332 = vmatprep.subr.mxu0 0.0
    %333 = vmatpush1.xpose.msra.mxu0 0.0
    %334 = vmatprep.subr.mxu0 0.0
    %335 = vmatpush1.xpose.msra.mxu0 0.0
    %336 = vmatprep.subr.mxu0 0.0
    %337 = vmatpush1.xpose.msra.mxu0 0.0
    %338 = vmatprep.subr.mxu0 0.0
    %339 = vmatpush1.xpose.msra.mxu0 0.0
    %340 = vmatprep.subr.mxu0 0.0
    %341 = vmatpush1.xpose.msra.mxu0 0.0
    %342 = vmatprep.subr.mxu0 0.0
    %343 = vmatpush1.xpose.msra.mxu0 0.0
    %344 = vmatprep.subr.mxu0 0.0
    %345 = vmatpush1.xpose.msra.mxu0 0.0
    %346 = vmatprep.subr.mxu0 0.0
    %347 = vmatpush1.xpose.msra.mxu0 0.0
    %348 = vmatprep.subr.mxu0 0.0
    %349 = vmatpush1.xpose.msra.mxu0 0.0
    %350 = vmatprep.subr.mxu0 0.0
    %351 = vmatpush1.xpose.msra.mxu0 0.0
    %352 = vmatprep.subr.mxu0 0.0
    %353 = vmatpush1.xpose.msra.mxu0 0.0
    %354 = vmatprep.subr.mxu0 0.0
    %355 = vmatpush1.xpose.msra.mxu0 0.0
    %356 = vmatprep.subr.mxu0 0.0
    %357 = vmatpush1.xpose.msra.mxu0 0.0
    %358 = vmatprep.subr.mxu0 0.0
    %359 = vmatpush1.xpose.msra.mxu0 0.0
    %360 = vmatprep.subr.mxu0 0.0
    %361 = vmatpush1.xpose.msra.mxu0 0.0
    %362 = vmatprep.subr.mxu0 0.0
    %363 = vmatpush1.xpose.msra.mxu0 0.0
    %364 = vmatprep.subr.mxu0 0.0
    %365 = vmatpush1.xpose.msra.mxu0 0.0
    %366 = vmatprep.subr.mxu0 0.0
    %367 = vmatpush1.xpose.msra.mxu0 0.0
    %368 = vmatprep.subr.mxu0 0.0
    %369 = vmatpush1.xpose.msra.mxu0 0.0
    %370 = vmatprep.subr.mxu0 0.0
    %371 = vmatpush1.xpose.msra.mxu0 0.0
    %372 = vmatprep.subr.mxu0 0.0
    %373 = vmatpush1.xpose.msra.mxu0 0.0
    %374 = vmatprep.subr.mxu0 0.0
    %375 = vmatpush1.xpose.msra.mxu0 0.0
    %376 = vmatprep.subr.mxu0 0.0
    %377 = vmatpush1.xpose.msra.mxu0 0.0
    %378 = vmatprep.subr.mxu0 0.0
    %379 = vmatpush1.xpose.msra.mxu0 0.0
    %380 = vmatprep.subr.mxu0 0.0
    %381 = vmatpush1.xpose.msra.mxu0 0.0
    %382 = vmatprep.subr.mxu0 0.0
    %383 = vmatpush1.xpose.msra.mxu0 0.0
    %384 = vmatprep.subr.mxu0 0.0
    %385 = vmatpush1.xpose.msra.mxu0 0.0
    %386 = vmatprep.subr.mxu0 0.0
    %387 = vmatpush1.xpose.msra.mxu0 0.0
    %388 = vmatprep.subr.mxu0 0.0
    %389 = vmatpush1.xpose.msra.mxu0 0.0
    %390 = vmatprep.subr.mxu0 0.0
    %391 = vmatpush1.xpose.msra.mxu0 0.0
    %392 = vmatprep.mubr.f32.mxu0 0.0
    %393 = vmatmul.mubr.f32.gmra.mrb[0].mxu0 %v323
    %v394 = vpop.f32.mrb[0].mxu0
    %v395 = vadd.f32 0.0, %v394
    %v396 = vpop.f32.mrb[0].mxu0
    %397 = vdwg.mxu0
    %v398 = vmul.f32 %v319, 0.17677669
    %v399 = vmul.f32 %v395, 0.17677669
    %v400 = vmul.f32 %v398, 1.442695
    %v401 = vpow.pop %v400
    %v402 = vmul.f32 %v399, 1.442695
    %v403 = vpow.pop %v402
    %v404 = vld [vmem:[#allocation7] sm:$0xff]
    %v405 = vld [vmem:[#allocation7 + $0x8] sm:$0xff]
    %v406 = vmul.f32 %v401, %v404
    %v407 = vmul.f32 %v403, %v405
    %vm408 = vcmask 64512
    %v409 = vsel %vm408, %v406, 0.0
    %410 = vadd.xlane.f32.xlu0 %v409
    %v411 = vpop.xlane.xlu0 %410
    %v412 = vsel %vm408, %v407, 0.0
    %413 = vadd.xlane.f32.xlu0 %v412
    %v414 = vpop.xlane.xlu0 %413
    %v415 = vadd.f32 %v411, 1e-10
    %v416 = vadd.f32 %v414, 1e-10
    %v417 = vrcp.pop %v415
    %v418 = vrcp.pop %v416
    %v419 = vmul.f32 %v406, %v417
    %v420 = vmul.f32 %v407, %v418
    %v422 = vsel %vm408, %v419, 0
    %424 = vmatprep.subr.mxu0 0.0
    %425 = vmatpush1.msra.mxu0 %v167
    %426 = vmatprep.subr.mxu0 0.0
    %427 = vmatpush1.msra.mxu0 0.0
    %428 = vmatprep.subr.mxu0 0.0
    %429 = vmatpush1.msra.mxu0 0.0
    %430 = vmatprep.subr.mxu0 0.0
    %431 = vmatpush1.msra.mxu0 0.0
    %432 = vmatprep.subr.mxu0 0.0
    %433 = vmatpush1.msra.mxu0 0.0
    %434 = vmatprep.subr.mxu0 0.0
    %435 = vmatpush1.msra.mxu0 0.0
    %436 = vmatprep.subr.mxu0 0.0
    %437 = vmatpush1.msra.mxu0 0.0
    %438 = vmatprep.subr.mxu0 0.0
    %439 = vmatpush1.msra.mxu0 0.0
    %440 = vmatprep.subr.mxu0 0.0
    %441 = vmatpush1.msra.mxu0 0.0
    %442 = vmatprep.subr.mxu0 0.0
    %443 = vmatpush1.msra.mxu0 0.0
    %444 = vmatprep.subr.mxu0 0.0
    %445 = vmatpush1.msra.mxu0 0.0
    %446 = vmatprep.subr.mxu0 0.0
    %447 = vmatpush1.msra.mxu0 0.0
    %448 = vmatprep.subr.mxu0 0.0
    %449 = vmatpush1.msra.mxu0 0.0
    %450 = vmatprep.subr.mxu0 0.0
    %451 = vmatpush1.msra.mxu0 0.0
    %452 = vmatprep.subr.mxu0 0.0
    %453 = vmatpush1.msra.mxu0 0.0
    %454 = vmatprep.subr.mxu0 0.0
    %455 = vmatpush1.msra.mxu0 0.0
    %456 = vmatprep.subr.mxu0 0.0
    %457 = vmatpush1.msra.mxu0 0.0
    %458 = vmatprep.subr.mxu0 0.0
    %459 = vmatpush1.msra.mxu0 0.0
    %460 = vmatprep.subr.mxu0 0.0
    %461 = vmatpush1.msra.mxu0 0.0
    %462 = vmatprep.subr.mxu0 0.0
    %463 = vmatpush1.msra.mxu0 0.0
    %464 = vmatprep.subr.mxu0 0.0
    %465 = vmatpush1.msra.mxu0 0.0
    %466 = vmatprep.subr.mxu0 0.0
    %467 = vmatpush1.msra.mxu0 0.0
    %468 = vmatprep.subr.mxu0 0.0
    %469 = vmatpush1.msra.mxu0 0.0
    %470 = vmatprep.subr.mxu0 0.0
    %471 = vmatpush1.msra.mxu0 0.0
    %472 = vmatprep.subr.mxu0 0.0
    %473 = vmatpush1.msra.mxu0 0.0
    %474 = vmatprep.subr.mxu0 0.0
    %475 = vmatpush1.msra.mxu0 0.0
    %476 = vmatprep.subr.mxu0 0.0
    %477 = vmatpush1.msra.mxu0 0.0
    %478 = vmatprep.subr.mxu0 0.0
    %479 = vmatpush1.msra.mxu0 0.0
    %480 = vmatprep.subr.mxu0 0.0
    %481 = vmatpush1.msra.mxu0 0.0
    %482 = vmatprep.subr.mxu0 0.0
    %483 = vmatpush1.msra.mxu0 0.0
    %484 = vmatprep.subr.mxu0 0.0
    %485 = vmatpush1.msra.mxu0 0.0
    %486 = vmatprep.subr.mxu0 0.0
    %487 = vmatpush1.msra.mxu0 0.0
    %488 = vmatprep.mubr.f32.mxu0 0.0
    %489 = vmatmul.mubr.f32.gmra.mrb[0].mxu0 %v422
    %v490 = vpop.f32.mrb[0].mxu0
    %v491 = vadd.f32 0.0, %v490
    %v492 = vpop.f32.mrb[0].mxu0
    %493 = vdwg.mxu0
    %v495 = vsel %vm408, %v420, 0
    %497 = vmatprep.subr.mxu0 0.0
    %498 = vmatpush1.msra.mxu0 %v240
    %499 = vmatprep.subr.mxu0 0.0
    %500 = vmatpush1.msra.mxu0 0.0
    %501 = vmatprep.subr.mxu0 0.0
    %502 = vmatpush1.msra.mxu0 0.0
    %503 = vmatprep.subr.mxu0 0.0
    %504 = vmatpush1.msra.mxu0 0.0
    %505 = vmatprep.subr.mxu0 0.0
    %506 = vmatpush1.msra.mxu0 0.0
    %507 = vmatprep.subr.mxu0 0.0
    %508 = vmatpush1.msra.mxu0 0.0
    %509 = vmatprep.subr.mxu0 0.0
    %510 = vmatpush1.msra.mxu0 0.0
    %511 = vmatprep.subr.mxu0 0.0
    %512 = vmatpush1.msra.mxu0 0.0
    %513 = vmatprep.subr.mxu0 0.0
    %514 = vmatpush1.msra.mxu0 0.0
    %515 = vmatprep.subr.mxu0 0.0
    %516 = vmatpush1.msra.mxu0 0.0
    %517 = vmatprep.subr.mxu0 0.0
    %518 = vmatpush1.msra.mxu0 0.0
    %519 = vmatprep.subr.mxu0 0.0
    %520 = vmatpush1.msra.mxu0 0.0
    %521 = vmatprep.subr.mxu0 0.0
    %522 = vmatpush1.msra.mxu0 0.0
    %523 = vmatprep.subr.mxu0 0.0
    %524 = vmatpush1.msra.mxu0 0.0
    %525 = vmatprep.subr.mxu0 0.0
    %526 = vmatpush1.msra.mxu0 0.0
    %527 = vmatprep.subr.mxu0 0.0
    %528 = vmatpush1.msra.mxu0 0.0
    %529 = vmatprep.subr.mxu0 0.0
    %530 = vmatpush1.msra.mxu0 0.0
    %531 = vmatprep.subr.mxu0 0.0
    %532 = vmatpush1.msra.mxu0 0.0
    %533 = vmatprep.subr.mxu0 0.0
    %534 = vmatpush1.msra.mxu0 0.0
    %535 = vmatprep.subr.mxu0 0.0
    %536 = vmatpush1.msra.mxu0 0.0
    %537 = vmatprep.subr.mxu0 0.0
    %538 = vmatpush1.msra.mxu0 0.0
    %539 = vmatprep.subr.mxu0 0.0
    %540 = vmatpush1.msra.mxu0 0.0
    %541 = vmatprep.subr.mxu0 0.0
    %542 = vmatpush1.msra.mxu0 0.0
    %543 = vmatprep.subr.mxu0 0.0
    %544 = vmatpush1.msra.mxu0 0.0
    %545 = vmatprep.subr.mxu0 0.0
    %546 = vmatpush1.msra.mxu0 0.0
    %547 = vmatprep.subr.mxu0 0.0
    %548 = vmatpush1.msra.mxu0 0.0
    %549 = vmatprep.subr.mxu0 0.0
    %550 = vmatpush1.msra.mxu0 0.0
    %551 = vmatprep.subr.mxu0 0.0
    %552 = vmatpush1.msra.mxu0 0.0
    %553 = vmatprep.subr.mxu0 0.0
    %554 = vmatpush1.msra.mxu0 0.0
    %555 = vmatprep.subr.mxu0 0.0
    %556 = vmatpush1.msra.mxu0 0.0
    %557 = vmatprep.subr.mxu0 0.0
    %558 = vmatpush1.msra.mxu0 0.0
    %559 = vmatprep.subr.mxu0 0.0
    %560 = vmatpush1.msra.mxu0 0.0
    %561 = vmatprep.mubr.f32.mxu0 0.0
    %562 = vmatmul.mubr.f32.gmra.mrb[0].mxu0 %v495
    %v563 = vpop.f32.mrb[0].mxu0
    %v564 = vadd.f32 0.0, %v563
    %v565 = vpop.f32.mrb[0].mxu0
    %566 = vdwg.mxu0
    %567 = vst.msk [vmem:[#allocation10] sm:$0xff] %vm245, %v491
    %568 = vst.msk [vmem:[#allocation10 + $0x8] sm:$0xff] %vm245, %v564
    // Predicated region
    $region34: #{tpu_custom_call.1} parent=1 // pred_check
      _
    $region35: #{tpu_custom_call.1} parent=1 // pred_check_branch
      %570 = sbr.rel (0) target = $region37
    $region36: #{tpu_custom_call.1} parent=1 // pred_region
      %s572 = ssub.s32 256, 256
      %573 = vsyncadd [#allocation4], %s572
      %s574 = sshll.u32 [#allocation10], 4
      %s575 = int_to_ptr.vmem [resolvable:$true] %s574
      %580 = dma.vmem_to_hbm [thread:$0]  %s575, 256, %s4, [#allocation4], 128, 128, 8
    $region37: #{tpu_custom_call.1} parent=1 // pred_fallthru
      _
    // Predicated region
    $region38: #{tpu_custom_call.1} parent=1 // pred_check
      _
    $region39: #{tpu_custom_call.1} parent=1 // pred_check_branch
      %582 = sbr.rel (0) target = $region41
    $region40: #{tpu_custom_call.1} parent=1 // pred_region
      %583 = dma.done [#allocation4], 256
    $region41: #{tpu_custom_call.1} parent=1 // pred_fallthru
      _
    %584 = vsyncpa [#allocation3], 1
    %585 = vsyncpa [#allocation6], 1
    %586 = vsyncpa [#allocation9], 1
    %587 = vsyncpa [#allocation4], 1

</llo_original>
